<compile_context>
chip_gen: v6e
topology: v6e:2x2x1
jax: 0.10.0
libtpu: 0.0.40
codegen_flags: <defaults>
</compile_context>

<pallas_src>
import functools

import jax
import jax.numpy as jnp
from jax import lax
from jax.experimental import pallas as pl
from jax.experimental.pallas import tpu as pltpu


def _round_up(x, m):
    return (x + m - 1) // m * m


def _cdiv(a, b):
    return -(-a // b)


def _vmem_budget_bytes():
    """~75% of physical VMEM (v5e/v6e: 128 MiB -> 96 MiB, v7x: 64 MiB -> 48 MiB)."""
    phys = 64 * 2 ** 20
    try:
        phys = int(pltpu.get_tpu_info().vmem_capacity_bytes)
    except Exception:
        pass
    return int(min(phys, 128 * 2 ** 20)) * 3 // 4


def _pick_col_tile(total, per_unit_bytes, budget):
    """Largest multiple of 128 that divides `total` and whose footprint fits `budget`."""
    q = total // 128
    for d in range(q, 0, -1):
        if q % d == 0 and d * 128 * per_unit_bytes <= budget:
            return d * 128
    return 128


def _normalize_transpose_kernel(dv, w_ref, wt_ref):
    """OWNNorm(norm_groups=outdim) == per-row center + L2 normalize; emit transposed.

    w_ref:  (TILE_O, K_pad) raw weight rows (columns >= dv are zero padding).
    wt_ref: (K_pad, TILE_O) normalized weight, transposed (optionally bf16), so the
            hot matmul is a plain (B,K) x (K,O) NN contraction on the MXU.
    Runs once per modality — the one-time XLU transpose lives here, not per tile.
    """
    wv = w_ref[...]
    # NOTE: mean via sum*(1/dv) and lax.rsqrt differ from the reference's division /
    # sqrt-then-divide only at the ULP level (well inside 1e-5 for f32).
    mean = jnp.sum(wv, axis=-1, keepdims=True) * (1.0 / dv)
    wc = wv - mean
    if dv != wv.shape[-1]:
        col = lax.broadcasted_iota(jnp.int32, wv.shape, 1)
        wc = wc * (col < dv).astype(jnp.float32)      # keep padded columns exactly 0
    ss = jnp.sum(wc * wc, axis=-1, keepdims=True)
    # Guard only degenerate all-zero (padding) rows; a truly constant real row would
    # be NaN/Inf in the reference — we intentionally return 0 there instead.
    inv = jnp.where(ss > 0.0, lax.rsqrt(ss), 0.0)
    wt_ref[...] = jnp.transpose(wc * inv).astype(wt_ref.dtype)


def _ortho_matmul_kernel(modal_num, *refs):
    """Fused per-modality matmul + weighted combine for one (O-tile, B-tile) block.

    refs layout:
      x_0..x_{M-1}    : (TILE_B, Kv_pad)   batch tile per modality
      wT_0..wT_{M-1}  : (Kv_pad, TILE_O)   normalized, pre-transposed weights
      a               : (M, TILE_O)        modality scales
      bias            : (1, TILE_O)
      out_0..out_{M-1}: (TILE_B, TILE_O)   per-modality outputs
      comb            : (TILE_B, TILE_O)   combined output
    """
    m = modal_num
    x_refs = refs[:m]
    w_refs = refs[m:2 * m]
    a_ref, b_ref = refs[2 * m], refs[2 * m + 1]
    out_refs = refs[2 * m + 2:3 * m + 2]
    comb_ref = refs[3 * m + 2]

    a_all = a_ref[...]                                # (M, TILE_O), read once
    # Combined output lives in a local value; single store at loop exit
    # (no M-deep read-modify-write chain on comb_ref).
    comb = jnp.broadcast_to(b_ref[...], comb_ref.shape)
    for v in range(m):                                # static loop over modalities
        ov = lax.dot_general(x_refs[v][...], w_refs[v][...],
                             (((1,), (0,)), ((), ())),          # (B,K) x (K,O), NN
                             preferred_element_type=jnp.float32)
        out_refs[v][...] = ov.astype(out_refs[v].dtype)
        comb = comb + ov * a_all[v][None, :]
    comb_ref[...] = comb


def orthogonal_linear_forward(x, weight, bias, a, indim, *, tile_b=None,
                              use_bf16=True, out_dtype=jnp.float32):
    """Forward pass of `orthogonal_linear`.

    x: (B, sum(indim)); weight: (O, sum(indim)); bias: (1, O); a: (M, O).
    tile_b:    optional max batch tile (auto-sized from the VMEM footprint if None).
    use_bf16:  cast matmul operands to bf16 (MXU fast path on v5e/v6e/v7x; f32
               accumulation). Set False for exact f32 parity (~1e-5).
    out_dtype: dtype of the per-modality outputs (bf16 halves their HBM writeback
               on bandwidth-limited parts, e.g. v5e).
    Returns ([out_0, ..., out_{M-1}], combined).
    """
    B = x.shape[0]
    O = weight.shape[0]
    M = len(indim)
    assert a.shape[0] == M and weight.shape[1] == sum(indim)

    compute_dtype = jnp.bfloat16 if use_bf16 else jnp.float32
    elt_x = jnp.dtype(compute_dtype).itemsize
    elt_out = jnp.dtype(out_dtype).itemsize

    o_pad = _round_up(O, 128)
    dv_pads = [_round_up(dv, 128) for dv in indim]     # per-modality K padding

    budget = _vmem_budget_bytes()

    # ---- Tile sizing from the actual VMEM footprint. ------------------------
    # O tiles: bound the (possibly resident) weight by ~1/3 of the budget.
    w_per_col = sum(dv_pads) * elt_x * 2 + (M + 1) * 4 * 2     # wT + a + bias (dbl-buf)
    tile_o = _pick_col_tile(o_pad, w_per_col, budget // 3)
    grid_o = o_pad // tile_o
    # Batch tiles: x (double-buffered) + per-modality outs + combined output.
    row_bytes = (sum(dv_pads) * elt_x * 2
                 + M * tile_o * elt_out * 2
                 + tile_o * 4 * 2)
    avail = max(budget - tile_o * w_per_col, budget // 4)
    tile_b_max = 512 if tile_b is None else max(8, _round_up(int(tile_b), 8))
    tile_b_fit = max(8, min(tile_b_max, (avail // max(row_bytes, 1)) // 8 * 8))
    # Minimize batch padding (bounded by a few rows per tile), keep 8-aligned.
    n_b = _cdiv(B, tile_b_fit)
    tile_b = _round_up(_cdiv(B, n_b), 8)
    b_pad = _round_up(B, tile_b)
    grid_b = b_pad // tile_b

    # ---- Lane-dense per-modality operands (pad/copy only when necessary). ---
    # NOTE: these slices are plain XLA ops; storing activations per-modality-padded
    # upstream (or enabling allow_input_fusion) removes this copy entirely.
    x_parts, w_parts = [], []
    cur = 0
    for dv, dvp in zip(indim, dv_pads):
        xv = x[:, cur:cur + dv].astype(compute_dtype)
        if b_pad != B or dvp != dv:
            xv = jnp.pad(xv, ((0, b_pad - B), (0, dvp - dv)))
        x_parts.append(xv)
        wv = weight[:, cur:cur + dv].astype(jnp.float32)
        if o_pad != O or dvp != dv:
            wv = jnp.pad(wv, ((0, o_pad - O), (0, dvp - dv)))
        w_parts.append(wv)
        cur += dv
    a_pad = jnp.pad(a.astype(jnp.float32), ((0, 0), (0, o_pad - O)))        # (M, O_pad)
    bias_pad = jnp.pad(bias.astype(jnp.float32), ((0, 0), (0, o_pad - O)))  # (1, O_pad)

    # ---- Step 1: normalize + transpose each modality's weight ONCE. ---------
    wt_parts = []
    for dv, dvp, wv in zip(indim, dv_pads, w_parts):
        per_row = dvp * 4 * 2 + dvp * elt_x * 2        # in + out, double-buffered
        tile_on = _pick_col_tile(o_pad, per_row, budget // 2)
        wt = pl.pallas_call(
            functools.partial(_normalize_transpose_kernel, dv),
            out_shape=jax.ShapeDtypeStruct((dvp, o_pad), compute_dtype),
            grid=(o_pad // tile_on,),
            in_specs=[pl.BlockSpec((tile_on, dvp), lambda i: (i, 0))],
            out_specs=pl.BlockSpec((dvp, tile_on), lambda i: (0, i)),
            compiler_params=pltpu.CompilerParams(
                dimension_semantics=("parallel",),
                vmem_limit_bytes=budget),
        )(wv)
        wt_parts.append(wt)

    # ---- Step 2: (O-tile, B-tile) fused matmul + combine. -------------------
    cost = pl.CostEstimate(
        flops=int(2 * b_pad * o_pad * sum(dv_pads)),
        transcendentals=0,
        bytes_accessed=int(grid_o * sum(xp.size for xp in x_parts) * elt_x
                           + sum(wt.size for wt in wt_parts) * elt_x
                           + M * b_pad * o_pad * elt_out
                           + b_pad * o_pad * 4),
    )
    resident = grid_o == 1      # weight / a / bias block indices constant over grid

    def _call(single_buffer):
        res_kw = {}
        if single_buffer and resident and hasattr(pl, "Buffered"):
            # Resident operands: one VMEM buffer suffices (saves 2x weight VMEM).
            res_kw = dict(pipeline_mode=pl.Buffered(buffer_count=1))
        in_specs = (
            [pl.BlockSpec((tile_b, dvp), lambda jo, ib: (ib, 0)) for dvp in dv_pads]
            + [pl.BlockSpec((dvp, tile_o), lambda jo, ib: (0, jo), **res_kw)
               for dvp in dv_pads]
            + [pl.BlockSpec((M, tile_o), lambda jo, ib: (0, jo), **res_kw),
               pl.BlockSpec((1, tile_o), lambda jo, ib: (0, jo), **res_kw)]
        )
        out_specs = [pl.BlockSpec((tile_b, tile_o), lambda jo, ib: (ib, jo))
                     for _ in range(M + 1)]
        out_shapes = ([jax.ShapeDtypeStruct((b_pad, o_pad), out_dtype)
                       for _ in range(M)]
                      + [jax.ShapeDtypeStruct((b_pad, o_pad), jnp.float32)])
        return pl.pallas_call(
            functools.partial(_ortho_matmul_kernel, M),
            out_shape=out_shapes,
            grid=(grid_o, grid_b),
            in_specs=in_specs,
            out_specs=out_specs,
            compiler_params=pltpu.CompilerParams(
                dimension_semantics=("parallel", "parallel"),
                vmem_limit_bytes=budget),
            cost_estimate=cost,
        )(*x_parts, *wt_parts, a_pad, bias_pad)

    try:
        results = _call(True)
    except Exception:
        # Graceful fallback for jax builds that reject pipeline_mode=Buffered(1).
        results = _call(False)

    outs = [results[v][:B, :O] for v in range(M)]
    combined = results[M][:B, :O]
    return outs, combined


def _reference(x, weight, bias, a, indim):
    """Pure-JAX reference mirroring the PyTorch forward."""
    cur = 0
    outs = []
    output = None
    for v, dv in enumerate(indim):
        wv = weight[:, cur:cur + dv]
        xv = x[:, cur:cur + dv]
        cur += dv
        wc = wv - wv.mean(axis=-1, keepdims=True)
        wn = wc / jnp.sqrt((wc * wc).sum(axis=-1, keepdims=True))
        ov = xv @ wn.T
        outs.append(ov)
        term = ov * a[v][None, :]
        output = term if output is None else output + term
    return outs, output + bias[0][None, :]


if __name__ == "__main__":
    # Module config: the module defines a_0 and a_1 -> modal_num must be 2.
    indim = [16, 16]
    outdim = 32
    batch = 8

    key = jax.random.PRNGKey(0)
    kx, kw, kb = jax.random.split(key, 3)
    x = jax.random.normal(kx, (batch, sum(indim)), dtype=jnp.float32)
    fc_weight = 0.1 * jax.random.normal(kw, (outdim, sum(indim)), dtype=jnp.float32)
    fc_bias = 0.01 * jax.random.normal(kb, (1, outdim), dtype=jnp.float32)
    a = jnp.full((len(indim), outdim), 0.1, dtype=jnp.float32)   # a_0, a_1 = 0.1

    ref_outs, ref_output = _reference(x, fc_weight, fc_bias, a, indim)

    # Exact-parity f32 path.
    outs, output = orthogonal_linear_forward(x, fc_weight, fc_bias, a, indim,
                                             use_bf16=False)
    jax.block_until_ready(output)
    for o, r in zip(outs, ref_outs):
        assert jnp.allclose(o, r, atol=1e-5, rtol=1e-5), "per-modality mismatch (f32)"
    assert jnp.allclose(output, ref_output, atol=1e-5, rtol=1e-5), "combined mismatch (f32)"

    # Fast bf16-operand MXU path (f32 accumulation) — looser tolerance by design.
    outs16, output16 = orthogonal_linear_forward(x, fc_weight, fc_bias, a, indim,
                                                 use_bf16=True)
    jax.block_until_ready(output16)
    for o, r in zip(outs16, ref_outs):
        assert float(jnp.max(jnp.abs(o.astype(jnp.float32) - r))) < 0.15, \
            "per-modality mismatch (bf16)"
    assert float(jnp.max(jnp.abs(output16 - ref_output))) < 0.05, "combined mismatch (bf16)"

    print("KERNEL_OK")
</pallas_src>

<mosaic_0001>
module attributes {stable_mosaic.version = 11 : i64} {
  func.func @_normalize_transpose_kernel(%arg0: i32, %arg1: memref<128x128xf32, #tpu.memory_space<vmem>>, %arg2: memref<128x128xf32, #tpu.memory_space<vmem>>) attributes {dimension_semantics = [#tpu.dimension_semantics<parallel>], iteration_bounds = array<i64: 1>, scalar_prefetch = 0 : i64, scratch_operands = 0 : i64, tpu.core_type = #tpu.core_type<tc>, window_params = [{transform_indices = @transform_0, window_bounds = array<i64: 128, 128>}, {transform_indices = @transform_1, window_bounds = array<i64: 128, 128>}]} {
    %c0 = arith.constant 0 : index
    %c0_0 = arith.constant 0 : index
    %0 = vector.load %arg1[%c0, %c0_0] : memref<128x128xf32, #tpu.memory_space<vmem>>, vector<128x128xf32>
    %cst = arith.constant dense<0.000000e+00> : vector<128xf32>
    %1 = vector.multi_reduction <add>, %0, %cst [1] : vector<128x128xf32> to vector<128xf32>
    %2 = vector.shape_cast %1 : vector<128xf32> to vector<128x1xf32>
    %cst_1 = arith.constant 6.250000e-02 : f32
    %3 = vector.broadcast %cst_1 : f32 to vector<128x1xf32>
    %4 = arith.mulf %2, %3 : vector<128x1xf32>
    %5 = vector.broadcast %4 : vector<128x1xf32> to vector<128x128xf32>
    %6 = arith.subf %0, %5 : vector<128x128xf32>
    %7 = tpu.iota {dimensions = array<i32: 1>} : vector<128x128xi32>
    %c16_i32 = arith.constant 16 : i32
    %8 = vector.broadcast %c16_i32 : i32 to vector<128x128xi32>
    %9 = arith.cmpi slt, %7, %8 : vector<128x128xi32>
    %10 = arith.extui %9 : vector<128x128xi1> to vector<128x128xi32>
    %11 = arith.sitofp %10 : vector<128x128xi32> to vector<128x128xf32>
    %12 = arith.mulf %6, %11 : vector<128x128xf32>
    %13 = arith.mulf %12, %12 : vector<128x128xf32>
    %cst_2 = arith.constant dense<0.000000e+00> : vector<128xf32>
    %14 = vector.multi_reduction <add>, %13, %cst_2 [1] : vector<128x128xf32> to vector<128xf32>
    %15 = vector.shape_cast %14 : vector<128xf32> to vector<128x1xf32>
    %cst_3 = arith.constant 0.000000e+00 : f32
    %16 = vector.broadcast %cst_3 : f32 to vector<128x1xf32>
    %17 = arith.cmpf ogt, %15, %16 : vector<128x1xf32>
    %18 = math.rsqrt %15 : vector<128x1xf32>
    %cst_4 = arith.constant 0.000000e+00 : f32
    %19 = vector.broadcast %cst_4 : f32 to vector<128x1xf32>
    %20 = arith.select %17, %18, %19 : vector<128x1xi1>, vector<128x1xf32>
    %21 = vector.broadcast %20 : vector<128x1xf32> to vector<128x128xf32>
    %22 = arith.mulf %12, %21 : vector<128x128xf32>
    %23 = tpu.transpose %22, [1, 0] : vector<128x128xf32> -> vector<128x128xf32>
    %c0_5 = arith.constant 0 : index
    %c0_6 = arith.constant 0 : index
    %24 = vector.load %arg2[%c0_5, %c0_6] : memref<128x128xf32, #tpu.memory_space<vmem>>, vector<128x128xf32>
    tpu.vector_store %arg2[%c0_5, %c0_6], %23 {strides = array<i32>} : memref<128x128xf32, #tpu.memory_space<vmem>>, vector<128x128xf32>,
    return
  }
  func.func @transform_0(%arg0: i32) -> (i32, i32) {
    %c0_i32 = arith.constant 0 : i32
    %c0_i32_0 = arith.constant 0 : i32
    return %arg0, %c0_i32 : i32, i32
  }
  func.func @transform_1(%arg0: i32) -> (i32, i32) {
    %c0_i32 = arith.constant 0 : i32
    %c0_i32_0 = arith.constant 0 : i32
    return %c0_i32, %arg0 : i32, i32
  }
}

</mosaic_0001>

<llo_original>
// kernel: tpu_custom_call.1
$region0: #{tpu_custom_call.1}
  #allocation0 [shape = 'u32[]', space=smem, size = 0x4, offset = 0x4, fixed_abs, tag = 'smem constant byte address 0x4 - core index']
  #allocation1 [shape = 'u32[144,128]{1,0:T(1,128)}', space=vmem, size = 0x12000, scoped, tag = 'internal scratch']
  %s0 = inlined_call_operand.hbm [shape: f32[128,128], index: 0, kind: input, shape index: {}]
  %s1 = inlined_call_operand.hbm [shape: f32[128,128], index: 1, kind: output, shape index: {}]
  %s2 = sld [smem:[#allocation0]]
  $region18: #{tpu_custom_call.1} parent=0
    _
  %s4 = ssub.s32 1, %s2
  %s5 = scalar_select 0, %s4, %s2
  $region1: #{tpu_custom_call.1} parent=0
    #allocation2 [shape = 'u8[65536]{0}', space=vmem, size = 0x10000, scoped, tag = 'input window, operand 0, single buffered']
    #allocation3 [shape = 's32[1]{0}', space=sflag, size = 0x4, scoped, tag = 'scoped memory for tpu_custom_call.1']
    #allocation4 [shape = 's32[1]{0}', space=sflag, size = 0x4, scoped, tag = 'scoped memory for tpu_custom_call.1']
    #allocation5 [shape = 'u8[65536]{0}', space=vmem, size = 0x10000, scoped, tag = 'output window, operand 0, single buffered']
    %6 = vsyncpa [#allocation3], 0
    %7 = vsyncpa [#allocation4], 0
    // Predicated region
    $region2: #{tpu_custom_call.1} parent=1 // pred_check
      _
    $region3: #{tpu_custom_call.1} parent=1 // pred_check_branch
      %9 = sbr.rel (0) target = $region5
    $region4: #{tpu_custom_call.1} parent=1 // pred_region
      %s11 = ssub.s32 2048, 2048
      %12 = vsyncadd [#allocation3], %s11
      %s13 = sshll.u32 [#allocation2], 4
      %s14 = int_to_ptr.vmem [resolvable:$true] %s13
      %19 = dma.hbm_to_vmem [thread:$0]  %s0, 2048, %s14, [#allocation3], 128, 128, 8
    $region5: #{tpu_custom_call.1} parent=1 // pred_fallthru
      _
    // Predicated region
    $region6: #{tpu_custom_call.1} parent=1 // pred_check
      _
    $region7: #{tpu_custom_call.1} parent=1 // pred_check_branch
      %21 = sbr.rel (0) target = $region9
    $region8: #{tpu_custom_call.1} parent=1 // pred_region
      %22 = dma.done [#allocation3], 2048
    $region9: #{tpu_custom_call.1} parent=1 // pred_fallthru
      _
    %v23 = vld [vmem:[#allocation2] sm:$0xff]
    %v24 = vld [vmem:[#allocation2 + $0x8] sm:$0xff]
    %v25 = vld [vmem:[#allocation2 + $0x10] sm:$0xff]
    %v26 = vld [vmem:[#allocation2 + $0x18] sm:$0xff]
    %v27 = vld [vmem:[#allocation2 + $0x20] sm:$0xff]
    %v28 = vld [vmem:[#allocation2 + $0x28] sm:$0xff]
    %v29 = vld [vmem:[#allocation2 + $0x30] sm:$0xff]
    %v30 = vld [vmem:[#allocation2 + $0x38] sm:$0xff]
    %v31 = vld [vmem:[#allocation2 + $0x40] sm:$0xff]
    %v32 = vld [vmem:[#allocation2 + $0x48] sm:$0xff]
    %v33 = vld [vmem:[#allocation2 + $0x50] sm:$0xff]
    %v34 = vld [vmem:[#allocation2 + $0x58] sm:$0xff]
    %v35 = vld [vmem:[#allocation2 + $0x60] sm:$0xff]
    %v36 = vld [vmem:[#allocation2 + $0x68] sm:$0xff]
    %v37 = vld [vmem:[#allocation2 + $0x70] sm:$0xff]
    %v38 = vld [vmem:[#allocation2 + $0x78] sm:$0xff]
    %39 = vadd.xlane.f32.xlu0 %v23
    %v40 = vpop.xlane.xlu0 %39
    %41 = vadd.xlane.f32.xlu0 %v24
    %v42 = vpop.xlane.xlu0 %41
    %43 = vadd.xlane.f32.xlu0 %v25
    %v44 = vpop.xlane.xlu0 %43
    %45 = vadd.xlane.f32.xlu0 %v26
    %v46 = vpop.xlane.xlu0 %45
    %47 = vadd.xlane.f32.xlu0 %v27
    %v48 = vpop.xlane.xlu0 %47
    %49 = vadd.xlane.f32.xlu0 %v28
    %v50 = vpop.xlane.xlu0 %49
    %51 = vadd.xlane.f32.xlu0 %v29
    %v52 = vpop.xlane.xlu0 %51
    %53 = vadd.xlane.f32.xlu0 %v30
    %v54 = vpop.xlane.xlu0 %53
    %55 = vadd.xlane.f32.xlu0 %v31
    %v56 = vpop.xlane.xlu0 %55
    %57 = vadd.xlane.f32.xlu0 %v32
    %v58 = vpop.xlane.xlu0 %57
    %59 = vadd.xlane.f32.xlu0 %v33
    %v60 = vpop.xlane.xlu0 %59
    %61 = vadd.xlane.f32.xlu0 %v34
    %v62 = vpop.xlane.xlu0 %61
    %63 = vadd.xlane.f32.xlu0 %v35
    %v64 = vpop.xlane.xlu0 %63
    %65 = vadd.xlane.f32.xlu0 %v36
    %v66 = vpop.xlane.xlu0 %65
    %67 = vadd.xlane.f32.xlu0 %v37
    %v68 = vpop.xlane.xlu0 %67
    %69 = vadd.xlane.f32.xlu0 %v38
    %v70 = vpop.xlane.xlu0 %69
    %v71 = vmul.f32 %v40, 0.0625
    %v72 = vmul.f32 %v42, 0.0625
    %v73 = vmul.f32 %v44, 0.0625
    %v74 = vmul.f32 %v46, 0.0625
    %v75 = vmul.f32 %v48, 0.0625
    %v76 = vmul.f32 %v50, 0.0625
    %v77 = vmul.f32 %v52, 0.0625
    %v78 = vmul.f32 %v54, 0.0625
    %v79 = vmul.f32 %v56, 0.0625
    %v80 = vmul.f32 %v58, 0.0625
    %v81 = vmul.f32 %v60, 0.0625
    %v82 = vmul.f32 %v62, 0.0625
    %v83 = vmul.f32 %v64, 0.0625
    %v84 = vmul.f32 %v66, 0.0625
    %v85 = vmul.f32 %v68, 0.0625
    %v86 = vmul.f32 %v70, 0.0625
    %v87 = vsub.f32 %v23, %v71
    %v88 = vsub.f32 %v24, %v72
    %v89 = vsub.f32 %v25, %v73
    %v90 = vsub.f32 %v26, %v74
    %v91 = vsub.f32 %v27, %v75
    %v92 = vsub.f32 %v28, %v76
    %v93 = vsub.f32 %v29, %v77
    %v94 = vsub.f32 %v30, %v78
    %v95 = vsub.f32 %v31, %v79
    %v96 = vsub.f32 %v32, %v80
    %v97 = vsub.f32 %v33, %v81
    %v98 = vsub.f32 %v34, %v82
    %v99 = vsub.f32 %v35, %v83
    %v100 = vsub.f32 %v36, %v84
    %v101 = vsub.f32 %v37, %v85
    %v102 = vsub.f32 %v38, %v86
    %v103 = vlaneseq
    %v104 = vand.u32 %v103, 127
    %vm105 = vcmp.lt.s32.totalorder %v104, 16
    %v106 = vsel %vm105, 1, 0
    %v107 = vcvt.s32.f32 %v106
    %v108 = vmul.f32 %v87, %v107
    %v109 = vmul.f32 %v88, %v107
    %v110 = vmul.f32 %v89, %v107
    %v111 = vmul.f32 %v90, %v107
    %v112 = vmul.f32 %v91, %v107
    %v113 = vmul.f32 %v92, %v107
    %v114 = vmul.f32 %v93, %v107
    %v115 = vmul.f32 %v94, %v107
    %v116 = vmul.f32 %v95, %v107
    %v117 = vmul.f32 %v96, %v107
    %v118 = vmul.f32 %v97, %v107
    %v119 = vmul.f32 %v98, %v107
    %v120 = vmul.f32 %v99, %v107
    %v121 = vmul.f32 %v100, %v107
    %v122 = vmul.f32 %v101, %v107
    %v123 = vmul.f32 %v102, %v107
    %v124 = vmul.f32 %v108, %v108
    %v125 = vmul.f32 %v109, %v109
    %v126 = vmul.f32 %v110, %v110
    %v127 = vmul.f32 %v111, %v111
    %v128 = vmul.f32 %v112, %v112
    %v129 = vmul.f32 %v113, %v113
    %v130 = vmul.f32 %v114, %v114
    %v131 = vmul.f32 %v115, %v115
    %v132 = vmul.f32 %v116, %v116
    %v133 = vmul.f32 %v117, %v117
    %v134 = vmul.f32 %v118, %v118
    %v135 = vmul.f32 %v119, %v119
    %v136 = vmul.f32 %v120, %v120
    %v137 = vmul.f32 %v121, %v121
    %v138 = vmul.f32 %v122, %v122
    %v139 = vmul.f32 %v123, %v123
    %140 = vadd.xlane.f32.xlu0 %v124
    %v141 = vpop.xlane.xlu0 %140
    %142 = vadd.xlane.f32.xlu0 %v125
    %v143 = vpop.xlane.xlu0 %142
    %144 = vadd.xlane.f32.xlu0 %v126
    %v145 = vpop.xlane.xlu0 %144
    %146 = vadd.xlane.f32.xlu0 %v127
    %v147 = vpop.xlane.xlu0 %146
    %148 = vadd.xlane.f32.xlu0 %v128
    %v149 = vpop.xlane.xlu0 %148
    %150 = vadd.xlane.f32.xlu0 %v129
    %v151 = vpop.xlane.xlu0 %150
    %152 = vadd.xlane.f32.xlu0 %v130
    %v153 = vpop.xlane.xlu0 %152
    %154 = vadd.xlane.f32.xlu0 %v131
    %v155 = vpop.xlane.xlu0 %154
    %156 = vadd.xlane.f32.xlu0 %v132
    %v157 = vpop.xlane.xlu0 %156
    %158 = vadd.xlane.f32.xlu0 %v133
    %v159 = vpop.xlane.xlu0 %158
    %160 = vadd.xlane.f32.xlu0 %v134
    %v161 = vpop.xlane.xlu0 %160
    %162 = vadd.xlane.f32.xlu0 %v135
    %v163 = vpop.xlane.xlu0 %162
    %164 = vadd.xlane.f32.xlu0 %v136
    %v165 = vpop.xlane.xlu0 %164
    %166 = vadd.xlane.f32.xlu0 %v137
    %v167 = vpop.xlane.xlu0 %166
    %168 = vadd.xlane.f32.xlu0 %v138
    %v169 = vpop.xlane.xlu0 %168
    %170 = vadd.xlane.f32.xlu0 %v139
    %v171 = vpop.xlane.xlu0 %170
    %vm172 = vcmp.gt.f32.partialorder %v141, 0.0
    %vm173 = vcmp.gt.f32.partialorder %v143, 0.0
    %vm174 = vcmp.gt.f32.partialorder %v145, 0.0
    %vm175 = vcmp.gt.f32.partialorder %v147, 0.0
    %vm176 = vcmp.gt.f32.partialorder %v149, 0.0
    %vm177 = vcmp.gt.f32.partialorder %v151, 0.0
    %vm178 = vcmp.gt.f32.partialorder %v153, 0.0
    %vm179 = vcmp.gt.f32.partialorder %v155, 0.0
    %vm180 = vcmp.gt.f32.partialorder %v157, 0.0
    %vm181 = vcmp.gt.f32.partialorder %v159, 0.0
    %vm182 = vcmp.gt.f32.partialorder %v161, 0.0
    %vm183 = vcmp.gt.f32.partialorder %v163, 0.0
    %vm184 = vcmp.gt.f32.partialorder %v165, 0.0
    %vm185 = vcmp.gt.f32.partialorder %v167, 0.0
    %vm186 = vcmp.gt.f32.partialorder %v169, 0.0
    %vm187 = vcmp.gt.f32.partialorder %v171, 0.0
    %v188 = vrsqrt.pop %v141
    %v189 = vrsqrt.pop %v143
    %v190 = vrsqrt.pop %v145
    %v191 = vrsqrt.pop %v147
    %v192 = vrsqrt.pop %v149
    %v193 = vrsqrt.pop %v151
    %v194 = vrsqrt.pop %v153
    %v195 = vrsqrt.pop %v155
    %v196 = vrsqrt.pop %v157
    %v197 = vrsqrt.pop %v159
    %v198 = vrsqrt.pop %v161
    %v199 = vrsqrt.pop %v163
    %v200 = vrsqrt.pop %v165
    %v201 = vrsqrt.pop %v167
    %v202 = vrsqrt.pop %v169
    %v203 = vrsqrt.pop %v171
    %v204 = vsel %vm172, %v188, 0.0
    %v205 = vsel %vm173, %v189, 0.0
    %v206 = vsel %vm174, %v190, 0.0
    %v207 = vsel %vm175, %v191, 0.0
    %v208 = vsel %vm176, %v192, 0.0
    %v209 = vsel %vm177, %v193, 0.0
    %v210 = vsel %vm178, %v194, 0.0
    %v211 = vsel %vm179, %v195, 0.0
    %v212 = vsel %vm180, %v196, 0.0
    %v213 = vsel %vm181, %v197, 0.0
    %v214 = vsel %vm182, %v198, 0.0
    %v215 = vsel %vm183, %v199, 0.0
    %v216 = vsel %vm184, %v200, 0.0
    %v217 = vsel %vm185, %v201, 0.0
    %v218 = vsel %vm186, %v202, 0.0
    %v219 = vsel %vm187, %v203, 0.0
    %v220 = vmul.f32 %v108, %v204
    %v221 = vmul.f32 %v109, %v205
    %v222 = vmul.f32 %v110, %v206
    %v223 = vmul.f32 %v111, %v207
    %v224 = vmul.f32 %v112, %v208
    %v225 = vmul.f32 %v113, %v209
    %v226 = vmul.f32 %v114, %v210
    %v227 = vmul.f32 %v115, %v211
    %v228 = vmul.f32 %v116, %v212
    %v229 = vmul.f32 %v117, %v213
    %v230 = vmul.f32 %v118, %v214
    %v231 = vmul.f32 %v119, %v215
    %v232 = vmul.f32 %v120, %v216
    %v233 = vmul.f32 %v121, %v217
    %v234 = vmul.f32 %v122, %v218
    %v235 = vmul.f32 %v123, %v219
    %236 = vxpose.xlu0.b32.start [1/16] %v220, 128
    %237 = vxpose.xlu0.b32.cont [2/16] %v221, 128
    %238 = vxpose.xlu0.b32.cont [3/16] %v222, 128
    %239 = vxpose.xlu0.b32.cont [4/16] %v223, 128
    %240 = vxpose.xlu0.b32.cont [5/16] %v224, 128
    %241 = vxpose.xlu0.b32.cont [6/16] %v225, 128
    %242 = vxpose.xlu0.b32.cont [7/16] %v226, 128
    %243 = vxpose.xlu0.b32.cont [8/16] %v227, 128
    %244 = vxpose.xlu0.b32.cont [9/16] %v228, 128
    %245 = vxpose.xlu0.b32.cont [10/16] %v229, 128
    %246 = vxpose.xlu0.b32.cont [11/16] %v230, 128
    %247 = vxpose.xlu0.b32.cont [12/16] %v231, 128
    %248 = vxpose.xlu0.b32.cont [13/16] %v232, 128
    %249 = vxpose.xlu0.b32.cont [14/16] %v233, 128
    %250 = vxpose.xlu0.b32.cont [15/16] %v234, 128
    %251 = vxpose.xlu0.b32.end [16/16] %v235, 128
    %v252 = vpop.trf.xlu0
    %v253 = vpop.trf.xlu0
    %v254 = vpop.trf.xlu0
    %v255 = vpop.trf.xlu0
    %v256 = vpop.trf.xlu0
    %v257 = vpop.trf.xlu0
    %v258 = vpop.trf.xlu0
    %v259 = vpop.trf.xlu0
    %v260 = vpop.trf.xlu0
    %v261 = vpop.trf.xlu0
    %v262 = vpop.trf.xlu0
    %v263 = vpop.trf.xlu0
    %v264 = vpop.trf.xlu0
    %v265 = vpop.trf.xlu0
    %v266 = vpop.trf.xlu0
    %v267 = vpop.trf.xlu0
    %268 = vst [vmem:[#allocation5] sm:$0xff] %v252
    %269 = vst [vmem:[#allocation5 + $0x8] sm:$0xff] %v253
    %270 = vst [vmem:[#allocation5 + $0x10] sm:$0xff] %v254
    %271 = vst [vmem:[#allocation5 + $0x18] sm:$0xff] %v255
    %272 = vst [vmem:[#allocation5 + $0x20] sm:$0xff] %v256
    %273 = vst [vmem:[#allocation5 + $0x28] sm:$0xff] %v257
    %274 = vst [vmem:[#allocation5 + $0x30] sm:$0xff] %v258
    %275 = vst [vmem:[#allocation5 + $0x38] sm:$0xff] %v259
    %276 = vst [vmem:[#allocation5 + $0x40] sm:$0xff] %v260
    %277 = vst [vmem:[#allocation5 + $0x48] sm:$0xff] %v261
    %278 = vst [vmem:[#allocation5 + $0x50] sm:$0xff] %v262
    %279 = vst [vmem:[#allocation5 + $0x58] sm:$0xff] %v263
    %280 = vst [vmem:[#allocation5 + $0x60] sm:$0xff] %v264
    %281 = vst [vmem:[#allocation5 + $0x68] sm:$0xff] %v265
    %282 = vst [vmem:[#allocation5 + $0x70] sm:$0xff] %v266
    %283 = vst [vmem:[#allocation5 + $0x78] sm:$0xff] %v267
    // Predicated region
    $region10: #{tpu_custom_call.1} parent=1 // pred_check
      _
    $region11: #{tpu_custom_call.1} parent=1 // pred_check_branch
      %285 = sbr.rel (0) target = $region13
    $region12: #{tpu_custom_call.1} parent=1 // pred_region
      %s287 = ssub.s32 2048, 2048
      %288 = vsyncadd [#allocation4], %s287
      %s289 = sshll.u32 [#allocation5], 4
      %s290 = int_to_ptr.vmem [resolvable:$true] %s289
      %295 = dma.vmem_to_hbm [thread:$0]  %s290, 2048, %s1, [#allocation4], 128, 128, 8
    $region13: #{tpu_custom_call.1} parent=1 // pred_fallthru
      _
    // Predicated region
    $region14: #{tpu_custom_call.1} parent=1 // pred_check
      _
    $region15: #{tpu_custom_call.1} parent=1 // pred_check_branch
      %297 = sbr.rel (0) target = $region17
    $region16: #{tpu_custom_call.1} parent=1 // pred_region
      %298 = dma.done [#allocation4], 2048
    $region17: #{tpu_custom_call.1} parent=1 // pred_fallthru
      _
    %299 = vsyncpa [#allocation3], 1
    %300 = vsyncpa [#allocation4], 1

</llo_original>
